<compile_context>
chip_gen: v7x
topology: tpu7x:2x2x1
jax: 0.10.0
libtpu: 0.0.40
codegen_flags: <defaults>
</compile_context>

<pallas_src>
import functools

import jax
import jax.numpy as jnp
from jax.experimental import pallas as pl
from jax.experimental.pallas import tpu as pltpu


# --------------------------------------------------------------------------
# Pallas kernel
# --------------------------------------------------------------------------
def deep_club_kernel(
    x_ref, y_ref, stats_ref,
    w1_ref, b1_ref, w2_ref, b2_ref, w3_ref, b3_ref, w4_ref, b4_ref,
    out_ref,
    *, y_dim, n_valid, tile_n, inv_n, dot_dtype,
):
    i = pl.program_id(0)

    x = x_ref[...]                                    # [TILE_N, x_dim]  (dot_dtype)
    y = y_ref[...]                                    # [TILE_N, y_dim]  (f32)

    def lin(a, w_ref, b_ref):
        # MXU matmul in dot_dtype with f32 accumulation; bias add in f32.
        return jnp.dot(a.astype(dot_dtype), w_ref[...],
                       preferred_element_type=jnp.float32) + b_ref[...]

    # Fully fused two-head MLP (block-diagonal weights built in the wrapper):
    #   a1 = [h1 | g],  a2 = [h2 | g],  a3 = [h3 | g],  a4 = [mu | pre-tanh logvar]
    a = jnp.maximum(lin(x, w1_ref, b1_ref), 0.0)
    a = jnp.maximum(lin(a, w2_ref, b2_ref), 0.0)      # g carried by identity block
    a = jnp.maximum(lin(a, w3_ref, b3_ref), 0.0)
    a = lin(a, w4_ref, b4_ref)

    mu = a[:, :y_dim]                                 # [TILE_N, y_dim]
    inv_ev = jnp.exp(-jnp.tanh(a[:, y_dim:]))         # exp(-logvar): EUP chain, no divide

    mean_y = stats_ref[0:1, :]                        # [1, y_dim]
    var_y = stats_ref[1:2, :]                         # [1, y_dim]

    # Closed-form negative term: mean_j (y[j,d]-mu[i,d])^2 = var_y + (mean_y-mu)^2
    msq = var_y + (mean_y - mu) ** 2
    # (positive - negative) per element, 1/(2N) folded in.
    fused = (msq - (mu - y) ** 2) * ((0.5 * inv_n) * inv_ev)    # [TILE_N, y_dim]

    # Mask zero-padded tail rows (only emitted when padding actually exists).
    if n_valid % tile_n != 0:
        row = i * tile_n + jax.lax.broadcasted_iota(jnp.int32, fused.shape, 0)
        fused = jnp.where(row < n_valid, fused, 0.0)

    # One per-tile partial column-sum (sublane reduction only); the tiny
    # cross-tile / cross-lane reduction happens in the wrapper.
    out_ref[...] = jnp.sum(fused, axis=0, keepdims=True).reshape(1, 1, y_dim)


# --------------------------------------------------------------------------
# Wrapper
# --------------------------------------------------------------------------
def _block_diag(a, b):
    ka, na = a.shape
    kb, nb = b.shape
    top = jnp.concatenate([a, jnp.zeros((ka, nb), a.dtype)], axis=1)
    bot = jnp.concatenate([jnp.zeros((kb, na), b.dtype), b], axis=1)
    return jnp.concatenate([top, bot], axis=0)


def _row_tile(n, cap=4096):
    # Biggest useful row tile: whole (8-rounded) batch if it fits under the cap,
    # otherwise the cap.  N is padded up to a multiple of the tile in the wrapper.
    if n <= cap:
        return max(8, ((n + 7) // 8) * 8)
    return cap


def deep_club_forward(x, y, params, *, matmul_dtype=jnp.bfloat16):
    (w1, b1, w2, b2, w3, b3, w4, b4, wv1, bv1, wv2, bv2) = params
    n, x_dim = x.shape
    y_dim = y.shape[1]
    g_w = wv1.shape[1]                   # hidden // 2 : width of carried logvar branch
    f32 = jnp.float32

    # Per-column y statistics for the closed-form negative term (on un-padded y,
    # biased variance -- must NOT be the unbiased estimator).
    y_f32 = y.astype(f32)
    mean_y = jnp.mean(y_f32, axis=0, keepdims=True)              # [1, y_dim]
    var_y = jnp.mean((y_f32 - mean_y) ** 2, axis=0, keepdims=True)
    stats = jnp.concatenate([mean_y, var_y], axis=0)             # [2, y_dim]

    # Build the fused block-diagonal network: columns = [p_mu branch | p_logvar branch].
    eye_g = jnp.eye(g_w, dtype=f32)
    zb_g = jnp.zeros((1, g_w), f32)
    W1 = jnp.concatenate([w1, wv1], axis=1); B1 = jnp.concatenate([b1, bv1], axis=1)
    W2 = _block_diag(w2, eye_g);             B2 = jnp.concatenate([b2, zb_g], axis=1)
    W3 = _block_diag(w3, eye_g);             B3 = jnp.concatenate([b3, zb_g], axis=1)
    W4 = _block_diag(w4, wv2);               B4 = jnp.concatenate([b4, bv2], axis=1)

    # Matmul operands in matmul_dtype; biases, y and the CLUB tail stay f32.
    Ws = [w.astype(matmul_dtype) for w in (W1, W2, W3, W4)]
    Bs = [b.astype(f32) for b in (B1, B2, B3, B4)]
    x_in = x.astype(matmul_dtype)
    y_in = y_f32

    tile_n = _row_tile(n)
    n_pad = pl.cdiv(n, tile_n) * tile_n
    if n_pad != n:
        x_in = jnp.pad(x_in, ((0, n_pad - n), (0, 0)))
        y_in = jnp.pad(y_in, ((0, n_pad - n), (0, 0)))
    num_tiles = n_pad // tile_n

    vmem = pl.BlockSpec(memory_space=pltpu.MemorySpace.VMEM)     # fully resident
    kernel = functools.partial(
        deep_club_kernel, y_dim=y_dim, n_valid=n, tile_n=tile_n,
        inv_n=1.0 / float(n), dot_dtype=matmul_dtype)

    weight_args = [t for pair in zip(Ws, Bs) for t in pair]      # W1,B1,...,W4,B4

    partials = pl.pallas_call(
        kernel,
        out_shape=jax.ShapeDtypeStruct((num_tiles, 1, y_dim), f32),
        grid=(num_tiles,),
        in_specs=[pl.BlockSpec((tile_n, x_dim), lambda i: (i, 0)),
                  pl.BlockSpec((tile_n, y_dim), lambda i: (i, 0)),
                  vmem,                                          # stats [2, y_dim]
                  vmem, vmem, vmem, vmem,                        # W1,B1,W2,B2
                  vmem, vmem, vmem, vmem],                       # W3,B3,W4,B4
        out_specs=pl.BlockSpec((1, 1, y_dim), lambda i: (i, 0, 0)),
        compiler_params=pltpu.CompilerParams(
            dimension_semantics=("parallel",)),                  # shardable on v7x
    )(x_in, y_in, stats, *weight_args)

    return jnp.sum(partials, dtype=f32)


# --------------------------------------------------------------------------
# Deterministic parameter init (mimics nn.Linear's U(-1/sqrt(fan_in), +))
# --------------------------------------------------------------------------
def make_linear(key, fan_in, fan_out):
    kw, kb = jax.random.split(key)
    bound = 1.0 / jnp.sqrt(fan_in)
    w = jax.random.uniform(kw, (fan_in, fan_out), jnp.float32, -bound, bound)
    b = jax.random.uniform(kb, (1, fan_out), jnp.float32, -bound, bound)
    return w, b


def init_params(key, x_dim, y_dim, hidden_size):
    ks = jax.random.split(key, 6)
    w1, b1 = make_linear(ks[0], x_dim, x_dim // 2)
    w2, b2 = make_linear(ks[1], x_dim // 2, x_dim // 4)
    w3, b3 = make_linear(ks[2], x_dim // 4, hidden_size // 2)
    w4, b4 = make_linear(ks[3], hidden_size // 2, y_dim)
    wv1, bv1 = make_linear(ks[4], x_dim, hidden_size // 2)
    wv2, bv2 = make_linear(ks[5], hidden_size // 2, y_dim)
    return (w1, b1, w2, b2, w3, b3, w4, b4, wv1, bv1, wv2, bv2)


# --------------------------------------------------------------------------
# Pure-JAX reference (mirrors the PyTorch forward exactly, incl. O(N^2) term).
# dot_dtype lets us build a bit-matched reference for the bf16 matmul path.
# --------------------------------------------------------------------------
def deep_club_reference(x, y, params, dot_dtype=jnp.float32):
    (w1, b1, w2, b2, w3, b3, w4, b4, wv1, bv1, wv2, bv2) = params

    def lin(a, w, b):
        return jnp.dot(a.astype(dot_dtype), w.astype(dot_dtype),
                       preferred_element_type=jnp.float32) + b

    h = jax.nn.relu(lin(x, w1, b1))
    h = jax.nn.relu(lin(h, w2, b2))
    h = jax.nn.relu(lin(h, w3, b3))
    mu = lin(h, w4, b4)
    g = jax.nn.relu(lin(x, wv1, bv1))
    logvar = jnp.tanh(lin(g, wv2, bv2))
    positive = -((mu - y) ** 2) / 2.0 / jnp.exp(logvar)
    negative = -jnp.mean((y[None, :, :] - mu[:, None, :]) ** 2, axis=1) / 2.0 / jnp.exp(logvar)
    return jnp.mean(positive.sum(-1) - negative.sum(-1))


if __name__ == "__main__":
    # Small shapes consistent with the module: x_dim=32, y_dim=8, hidden=32, N=8.
    N, x_dim, y_dim, hidden = 8, 32, 8, 32

    key = jax.random.PRNGKey(0)
    kx, ky, kp = jax.random.split(key, 3)
    x = jax.random.normal(kx, (N, x_dim), jnp.float32)
    y = jax.random.normal(ky, (N, y_dim), jnp.float32)
    params = init_params(kp, x_dim, y_dim, hidden)

    # f32 matmul path: must match the exact module-equivalent reference.
    out_f32 = jax.block_until_ready(
        deep_club_forward(x, y, params, matmul_dtype=jnp.float32))
    ref_f32 = deep_club_reference(x, y, params, jnp.float32)
    assert jnp.allclose(out_f32, ref_f32, rtol=5e-4, atol=1e-5), (out_f32, ref_f32)

    # Default bf16 matmul path (perf): compare against a reference that applies
    # the same per-layer bf16 input casts (f32 accumulation + f32 tail in both).
    out_bf16 = jax.block_until_ready(deep_club_forward(x, y, params))
    ref_bf16 = deep_club_reference(x, y, params, jnp.bfloat16)
    assert jnp.allclose(out_bf16, ref_bf16, rtol=1e-2, atol=1e-3), (out_bf16, ref_bf16)

    print("KERNEL_OK")
</pallas_src>

<mosaic_0001>
module attributes {stable_mosaic.version = 11 : i64} {
  func.func @deep_club_kernel(%arg0: i32, %arg1: memref<8x32xf32, #tpu.memory_space<vmem>>, %arg2: memref<8x8xf32, #tpu.memory_space<vmem>>, %arg3: memref<2x8xf32, #tpu.memory_space<vmem>>, %arg4: memref<32x32xf32, #tpu.memory_space<vmem>>, %arg5: memref<1x32xf32, #tpu.memory_space<vmem>>, %arg6: memref<32x24xf32, #tpu.memory_space<vmem>>, %arg7: memref<1x24xf32, #tpu.memory_space<vmem>>, %arg8: memref<24x32xf32, #tpu.memory_space<vmem>>, %arg9: memref<1x32xf32, #tpu.memory_space<vmem>>, %arg10: memref<32x16xf32, #tpu.memory_space<vmem>>, %arg11: memref<1x16xf32, #tpu.memory_space<vmem>>, %arg12: memref<1x1x8xf32, #tpu.memory_space<vmem>>) attributes {dimension_semantics = [#tpu.dimension_semantics<parallel>], iteration_bounds = array<i64: 1>, scalar_prefetch = 0 : i64, scratch_operands = 0 : i64, tpu.core_type = #tpu.core_type<tc>, window_params = [{transform_indices = @transform_0, window_bounds = array<i64: 8, 32>}, {transform_indices = @transform_1, window_bounds = array<i64: 8, 8>}, {pipeline_mode = #tpu.pipeline_mode<synchronous>, transform_indices = @transform_2, window_bounds = array<i64: 2, 8>}, {pipeline_mode = #tpu.pipeline_mode<synchronous>, transform_indices = @transform_3, window_bounds = array<i64: 32, 32>}, {pipeline_mode = #tpu.pipeline_mode<synchronous>, transform_indices = @transform_4, window_bounds = array<i64: 1, 32>}, {pipeline_mode = #tpu.pipeline_mode<synchronous>, transform_indices = @transform_5, window_bounds = array<i64: 32, 24>}, {pipeline_mode = #tpu.pipeline_mode<synchronous>, transform_indices = @transform_6, window_bounds = array<i64: 1, 24>}, {pipeline_mode = #tpu.pipeline_mode<synchronous>, transform_indices = @transform_7, window_bounds = array<i64: 24, 32>}, {pipeline_mode = #tpu.pipeline_mode<synchronous>, transform_indices = @transform_8, window_bounds = array<i64: 1, 32>}, {pipeline_mode = #tpu.pipeline_mode<synchronous>, transform_indices = @transform_9, window_bounds = array<i64: 32, 16>}, {pipeline_mode = #tpu.pipeline_mode<synchronous>, transform_indices = @transform_10, window_bounds = array<i64: 1, 16>}, {transform_indices = @transform_11, window_bounds = array<i64: 1, 1, 8>}]} {
    %c0 = arith.constant 0 : index
    %c0_0 = arith.constant 0 : index
    %0 = vector.load %arg1[%c0, %c0_0] : memref<8x32xf32, #tpu.memory_space<vmem>>, vector<8x32xf32>
    %c0_1 = arith.constant 0 : index
    %c0_2 = arith.constant 0 : index
    %1 = vector.load %arg2[%c0_1, %c0_2] : memref<8x8xf32, #tpu.memory_space<vmem>>, vector<8x8xf32>
    %c0_3 = arith.constant 0 : index
    %c0_4 = arith.constant 0 : index
    %2 = vector.load %arg4[%c0_3, %c0_4] : memref<32x32xf32, #tpu.memory_space<vmem>>, vector<32x32xf32>
    %cst = arith.constant dense<0.000000e+00> : vector<8x32xf32>
    %3 = tpu.matmul %0, %2, %cst {dimension_numbers = #tpu.dot_dimension_numbers<[1], [0], [0], [1], [0, 0, 1, 1], [], []>} : vector<8x32xf32>, vector<32x32xf32>, vector<8x32xf32> -> vector<8x32xf32>
    %c0_5 = arith.constant 0 : index
    %c0_6 = arith.constant 0 : index
    %4 = vector.load %arg5[%c0_5, %c0_6] : memref<1x32xf32, #tpu.memory_space<vmem>>, vector<1x32xf32>
    %5 = vector.broadcast %4 : vector<1x32xf32> to vector<8x32xf32>
    %6 = arith.addf %3, %5 : vector<8x32xf32>
    %cst_7 = arith.constant 0.000000e+00 : f32
    %7 = vector.broadcast %cst_7 : f32 to vector<8x32xf32>
    %8 = arith.maximumf %6, %7 : vector<8x32xf32>
    %c0_8 = arith.constant 0 : index
    %c0_9 = arith.constant 0 : index
    %9 = vector.load %arg6[%c0_8, %c0_9] : memref<32x24xf32, #tpu.memory_space<vmem>>, vector<32x24xf32>
    %cst_10 = arith.constant dense<0.000000e+00> : vector<8x24xf32>
    %10 = tpu.matmul %8, %9, %cst_10 {dimension_numbers = #tpu.dot_dimension_numbers<[1], [0], [0], [1], [0, 0, 1, 1], [], []>} : vector<8x32xf32>, vector<32x24xf32>, vector<8x24xf32> -> vector<8x24xf32>
    %c0_11 = arith.constant 0 : index
    %c0_12 = arith.constant 0 : index
    %11 = vector.load %arg7[%c0_11, %c0_12] : memref<1x24xf32, #tpu.memory_space<vmem>>, vector<1x24xf32>
    %12 = vector.broadcast %11 : vector<1x24xf32> to vector<8x24xf32>
    %13 = arith.addf %10, %12 : vector<8x24xf32>
    %cst_13 = arith.constant 0.000000e+00 : f32
    %14 = vector.broadcast %cst_13 : f32 to vector<8x24xf32>
    %15 = arith.maximumf %13, %14 : vector<8x24xf32>
    %c0_14 = arith.constant 0 : index
    %c0_15 = arith.constant 0 : index
    %16 = vector.load %arg8[%c0_14, %c0_15] : memref<24x32xf32, #tpu.memory_space<vmem>>, vector<24x32xf32>
    %cst_16 = arith.constant dense<0.000000e+00> : vector<8x32xf32>
    %17 = tpu.matmul %15, %16, %cst_16 {dimension_numbers = #tpu.dot_dimension_numbers<[1], [0], [0], [1], [0, 0, 1, 1], [], []>} : vector<8x24xf32>, vector<24x32xf32>, vector<8x32xf32> -> vector<8x32xf32>
    %c0_17 = arith.constant 0 : index
    %c0_18 = arith.constant 0 : index
    %18 = vector.load %arg9[%c0_17, %c0_18] : memref<1x32xf32, #tpu.memory_space<vmem>>, vector<1x32xf32>
    %19 = vector.broadcast %18 : vector<1x32xf32> to vector<8x32xf32>
    %20 = arith.addf %17, %19 : vector<8x32xf32>
    %cst_19 = arith.constant 0.000000e+00 : f32
    %21 = vector.broadcast %cst_19 : f32 to vector<8x32xf32>
    %22 = arith.maximumf %20, %21 : vector<8x32xf32>
    %c0_20 = arith.constant 0 : index
    %c0_21 = arith.constant 0 : index
    %23 = vector.load %arg10[%c0_20, %c0_21] : memref<32x16xf32, #tpu.memory_space<vmem>>, vector<32x16xf32>
    %cst_22 = arith.constant dense<0.000000e+00> : vector<8x16xf32>
    %24 = tpu.matmul %22, %23, %cst_22 {dimension_numbers = #tpu.dot_dimension_numbers<[1], [0], [0], [1], [0, 0, 1, 1], [], []>} : vector<8x32xf32>, vector<32x16xf32>, vector<8x16xf32> -> vector<8x16xf32>
    %c0_23 = arith.constant 0 : index
    %c0_24 = arith.constant 0 : index
    %25 = vector.load %arg11[%c0_23, %c0_24] : memref<1x16xf32, #tpu.memory_space<vmem>>, vector<1x16xf32>
    %26 = vector.broadcast %25 : vector<1x16xf32> to vector<8x16xf32>
    %27 = arith.addf %24, %26 : vector<8x16xf32>
    %28 = vector.extract_strided_slice %27 {offsets = [0, 0], sizes = [8, 8], strides = [1, 1]} : vector<8x16xf32> to vector<8x8xf32>
    %29 = vector.extract_strided_slice %27 {offsets = [0, 8], sizes = [8, 8], strides = [1, 1]} : vector<8x16xf32> to vector<8x8xf32>
    %30 = math.tanh %29 : vector<8x8xf32>
    %cst_25 = arith.constant 0.000000e+00 : f32
    %31 = vector.broadcast %cst_25 : f32 to vector<8x8xf32>
    %32 = arith.subf %31, %30 : vector<8x8xf32>
    %33 = math.exp %32 : vector<8x8xf32>
    %c0_26 = arith.constant 0 : index
    %c0_27 = arith.constant 0 : index
    %34 = vector.load %arg3[%c0_26, %c0_27] : memref<2x8xf32, #tpu.memory_space<vmem>>, vector<1x8xf32>
    %c1 = arith.constant 1 : index
    %c0_28 = arith.constant 0 : index
    %35 = vector.load %arg3[%c1, %c0_28] : memref<2x8xf32, #tpu.memory_space<vmem>>, vector<1x8xf32>
    %36 = vector.broadcast %34 : vector<1x8xf32> to vector<8x8xf32>
    %37 = arith.subf %36, %28 : vector<8x8xf32>
    %38 = arith.mulf %37, %37 : vector<8x8xf32>
    %39 = vector.broadcast %35 : vector<1x8xf32> to vector<8x8xf32>
    %40 = arith.addf %39, %38 : vector<8x8xf32>
    %41 = arith.subf %28, %1 : vector<8x8xf32>
    %42 = arith.mulf %41, %41 : vector<8x8xf32>
    %43 = arith.subf %40, %42 : vector<8x8xf32>
    %cst_29 = arith.constant 6.250000e-02 : f32
    %44 = vector.broadcast %cst_29 : f32 to vector<8x8xf32>
    %45 = arith.mulf %44, %33 : vector<8x8xf32>
    %46 = arith.mulf %43, %45 : vector<8x8xf32>
    %cst_30 = arith.constant dense<0.000000e+00> : vector<8xf32>
    %47 = vector.multi_reduction <add>, %46, %cst_30 [0] : vector<8x8xf32> to vector<8xf32>
    %48 = vector.shape_cast %47 : vector<8xf32> to vector<1x8xf32>
    %49 = vector.shape_cast %48 : vector<1x8xf32> to vector<1x1x8xf32>
    %c0_31 = arith.constant 0 : index
    %c0_32 = arith.constant 0 : index
    %c0_33 = arith.constant 0 : index
    %50 = vector.load %arg12[%c0_31, %c0_32, %c0_33] : memref<1x1x8xf32, #tpu.memory_space<vmem>>, vector<1x1x8xf32>
    tpu.vector_store %arg12[%c0_31, %c0_32, %c0_33], %49 {strides = array<i32>} : memref<1x1x8xf32, #tpu.memory_space<vmem>>, vector<1x1x8xf32>,
    return
  }
  func.func @transform_0(%arg0: i32) -> (i32, i32) {
    %c0_i32 = arith.constant 0 : i32
    %c0_i32_0 = arith.constant 0 : i32
    return %arg0, %c0_i32 : i32, i32
  }
  func.func @transform_1(%arg0: i32) -> (i32, i32) {
    %c0_i32 = arith.constant 0 : i32
    %c0_i32_0 = arith.constant 0 : i32
    return %arg0, %c0_i32 : i32, i32
  }
  func.func @transform_2(%arg0: i32) -> (i32, i32) {
    %c0_i32 = arith.constant 0 : i32
    %c0_i32_0 = arith.constant 0 : i32
    %c0_i32_1 = arith.constant 0 : i32
    return %c0_i32, %c0_i32_0 : i32, i32
  }
  func.func @transform_3(%arg0: i32) -> (i32, i32) {
    %c0_i32 = arith.constant 0 : i32
    %c0_i32_0 = arith.constant 0 : i32
    %c0_i32_1 = arith.constant 0 : i32
    return %c0_i32, %c0_i32_0 : i32, i32
  }
  func.func @transform_4(%arg0: i32) -> (i32, i32) {
    %c0_i32 = arith.constant 0 : i32
    %c0_i32_0 = arith.constant 0 : i32
    %c0_i32_1 = arith.constant 0 : i32
    return %c0_i32, %c0_i32_0 : i32, i32
  }
  func.func @transform_5(%arg0: i32) -> (i32, i32) {
    %c0_i32 = arith.constant 0 : i32
    %c0_i32_0 = arith.constant 0 : i32
    %c0_i32_1 = arith.constant 0 : i32
    return %c0_i32, %c0_i32_0 : i32, i32
  }
  func.func @transform_6(%arg0: i32) -> (i32, i32) {
    %c0_i32 = arith.constant 0 : i32
    %c0_i32_0 = arith.constant 0 : i32
    %c0_i32_1 = arith.constant 0 : i32
    return %c0_i32, %c0_i32_0 : i32, i32
  }
  func.func @transform_7(%arg0: i32) -> (i32, i32) {
    %c0_i32 = arith.constant 0 : i32
    %c0_i32_0 = arith.constant 0 : i32
    %c0_i32_1 = arith.constant 0 : i32
    return %c0_i32, %c0_i32_0 : i32, i32
  }
  func.func @transform_8(%arg0: i32) -> (i32, i32) {
    %c0_i32 = arith.constant 0 : i32
    %c0_i32_0 = arith.constant 0 : i32
    %c0_i32_1 = arith.constant 0 : i32
    return %c0_i32, %c0_i32_0 : i32, i32
  }
  func.func @transform_9(%arg0: i32) -> (i32, i32) {
    %c0_i32 = arith.constant 0 : i32
    %c0_i32_0 = arith.constant 0 : i32
    %c0_i32_1 = arith.constant 0 : i32
    return %c0_i32, %c0_i32_0 : i32, i32
  }
  func.func @transform_10(%arg0: i32) -> (i32, i32) {
    %c0_i32 = arith.constant 0 : i32
    %c0_i32_0 = arith.constant 0 : i32
    %c0_i32_1 = arith.constant 0 : i32
    return %c0_i32, %c0_i32_0 : i32, i32
  }
  func.func @transform_11(%arg0: i32) -> (i32, i32, i32) {
    %c0_i32 = arith.constant 0 : i32
    %c0_i32_0 = arith.constant 0 : i32
    %c0_i32_1 = arith.constant 0 : i32
    return %arg0, %c0_i32, %c0_i32_0 : i32, i32, i32
  }
}

</mosaic_0001>

<llo_original>
// kernel: tpu_custom_call.1
$region0: #{tpu_custom_call.1}
  #allocation0 [shape = 'u32[]', space=smem, size = 0x4, offset = 0x4, fixed_abs, tag = 'smem constant byte address 0x4 - core index']
  #allocation1 [shape = 'u32[144,128]{1,0:T(1,128)}', space=vmem, size = 0x12000, scoped, tag = 'internal scratch']
  %s0 = inlined_call_operand.vmem [shape: f32[8,32], index: 0, kind: input, shape index: {}]
  %s1 = inlined_call_operand.vmem [shape: f32[8,8], index: 1, kind: input, shape index: {}]
  %s2 = inlined_call_operand.vmem [shape: f32[2,8], index: 2, kind: input, shape index: {}]
  %s3 = inlined_call_operand.vmem [shape: f32[32,32], index: 3, kind: input, shape index: {}]
  %s4 = inlined_call_operand.vmem [shape: f32[1,32], index: 4, kind: input, shape index: {}]
  %s5 = inlined_call_operand.vmem [shape: f32[32,24], index: 5, kind: input, shape index: {}]
  %s6 = inlined_call_operand.vmem [shape: f32[1,24], index: 6, kind: input, shape index: {}]
  %s7 = inlined_call_operand.vmem [shape: f32[24,32], index: 7, kind: input, shape index: {}]
  %s8 = inlined_call_operand.vmem [shape: f32[1,32], index: 8, kind: input, shape index: {}]
  %s9 = inlined_call_operand.vmem [shape: f32[32,16], index: 9, kind: input, shape index: {}]
  %s10 = inlined_call_operand.vmem [shape: f32[1,16], index: 10, kind: input, shape index: {}]
  %s11 = inlined_call_operand.hbm [shape: f32[1,1,8], index: 11, kind: output, shape index: {}]
  %s12 = sld [smem:[#allocation0]]
  $region54: #{tpu_custom_call.1} parent=0
    _
  %s14 = ssub.s32 1, %s12
  %s15 = scalar_select 0, %s14, %s12
  $region1: #{tpu_custom_call.1} parent=0
    #allocation2 [shape = 'u8[512]{0}', space=vmem, size = 0x400, scoped, tag = 'output window, operand 0, single buffered']
    #allocation3 [shape = 's32[1]{0}', space=sflag, size = 0x4, scoped, tag = 'scoped memory for tpu_custom_call.1']
    %16 = vsyncpa [#allocation3], 0
    // Predicated region
    $region2: #{tpu_custom_call.1} parent=1 // pred_check
      _
    $region3: #{tpu_custom_call.1} parent=1 // pred_check_branch
      %18 = sbr.rel (0) target = $region5
    $region4: #{tpu_custom_call.1} parent=1 // pred_region
      _
    $region5: #{tpu_custom_call.1} parent=1 // pred_fallthru
      _
    // Predicated region
    $region6: #{tpu_custom_call.1} parent=1 // pred_check
      _
    $region7: #{tpu_custom_call.1} parent=1 // pred_check_branch
      %20 = sbr.rel (0) target = $region9
    $region8: #{tpu_custom_call.1} parent=1 // pred_region
      _
    $region9: #{tpu_custom_call.1} parent=1 // pred_fallthru
      _
    // Predicated region
    $region10: #{tpu_custom_call.1} parent=1 // pred_check
      _
    $region11: #{tpu_custom_call.1} parent=1 // pred_check_branch
      %22 = sbr.rel (0) target = $region13
    $region12: #{tpu_custom_call.1} parent=1 // pred_region
      _
    $region13: #{tpu_custom_call.1} parent=1 // pred_fallthru
      _
    // Predicated region
    $region14: #{tpu_custom_call.1} parent=1 // pred_check
      _
    $region15: #{tpu_custom_call.1} parent=1 // pred_check_branch
      %24 = sbr.rel (0) target = $region17
    $region16: #{tpu_custom_call.1} parent=1 // pred_region
      _
    $region17: #{tpu_custom_call.1} parent=1 // pred_fallthru
      _
    // Predicated region
    $region18: #{tpu_custom_call.1} parent=1 // pred_check
      _
    $region19: #{tpu_custom_call.1} parent=1 // pred_check_branch
      %26 = sbr.rel (0) target = $region21
    $region20: #{tpu_custom_call.1} parent=1 // pred_region
      _
    $region21: #{tpu_custom_call.1} parent=1 // pred_fallthru
      _
    // Predicated region
    $region22: #{tpu_custom_call.1} parent=1 // pred_check
      _
    $region23: #{tpu_custom_call.1} parent=1 // pred_check_branch
      %28 = sbr.rel (0) target = $region25
    $region24: #{tpu_custom_call.1} parent=1 // pred_region
      _
    $region25: #{tpu_custom_call.1} parent=1 // pred_fallthru
      _
    // Predicated region
    $region26: #{tpu_custom_call.1} parent=1 // pred_check
      _
    $region27: #{tpu_custom_call.1} parent=1 // pred_check_branch
      %30 = sbr.rel (0) target = $region29
    $region28: #{tpu_custom_call.1} parent=1 // pred_region
      _
    $region29: #{tpu_custom_call.1} parent=1 // pred_fallthru
      _
    // Predicated region
    $region30: #{tpu_custom_call.1} parent=1 // pred_check
      _
    $region31: #{tpu_custom_call.1} parent=1 // pred_check_branch
      %32 = sbr.rel (0) target = $region33
    $region32: #{tpu_custom_call.1} parent=1 // pred_region
      _
    $region33: #{tpu_custom_call.1} parent=1 // pred_fallthru
      _
    // Predicated region
    $region34: #{tpu_custom_call.1} parent=1 // pred_check
      _
    $region35: #{tpu_custom_call.1} parent=1 // pred_check_branch
      %34 = sbr.rel (0) target = $region37
    $region36: #{tpu_custom_call.1} parent=1 // pred_region
      _
    $region37: #{tpu_custom_call.1} parent=1 // pred_fallthru
      _
    // Predicated region
    $region38: #{tpu_custom_call.1} parent=1 // pred_check
      _
    $region39: #{tpu_custom_call.1} parent=1 // pred_check_branch
      %36 = sbr.rel (0) target = $region41
    $region40: #{tpu_custom_call.1} parent=1 // pred_region
      _
    $region41: #{tpu_custom_call.1} parent=1 // pred_fallthru
      _
    // Predicated region
    $region42: #{tpu_custom_call.1} parent=1 // pred_check
      _
    $region43: #{tpu_custom_call.1} parent=1 // pred_check_branch
      %38 = sbr.rel (0) target = $region45
    $region44: #{tpu_custom_call.1} parent=1 // pred_region
      _
    $region45: #{tpu_custom_call.1} parent=1 // pred_fallthru
      _
    %v39 = vld [vmem:[%s0] sm:$0xff]
    %v40 = vld [vmem:[%s1] sm:$0xff]
    %v41 = vld [vmem:[%s3] sm:$0xff]
    %v42 = vld [vmem:[%s3 + $0x8] sm:$0xff]
    %v43 = vld [vmem:[%s3 + $0x10] sm:$0xff]
    %v44 = vld [vmem:[%s3 + $0x18] sm:$0xff]
    %v45 = vld [vmem:[%s4] sm:$0x1]
    %v47 = vlaneseq
    %v48 = vshrl.u32 %v47, 7
    %v49 = vsub.s32 0, %v48
    %v50 = vrot.slane %v45, %v49
    %vm52 = vcmask 261120
    %v54 = vsel %vm52, %v39, 0
    %56 = vmatprep.subr.mxu0 0.0
    %57 = vmatpush1.msra.mxu0 %v41
    %58 = vmatprep.subr.mxu0 0.0
    %59 = vmatpush1.msra.mxu0 %v42
    %60 = vmatprep.subr.mxu0 0.0
    %61 = vmatpush1.msra.mxu0 %v43
    %62 = vmatprep.subr.mxu0 0.0
    %63 = vmatpush1.msra.mxu0 %v44
    %64 = vmatprep.subr.mxu0 0.0
    %65 = vmatpush1.msra.mxu0 0.0
    %66 = vmatprep.subr.mxu0 0.0
    %67 = vmatpush1.msra.mxu0 0.0
    %68 = vmatprep.subr.mxu0 0.0
    %69 = vmatpush1.msra.mxu0 0.0
    %70 = vmatprep.subr.mxu0 0.0
    %71 = vmatpush1.msra.mxu0 0.0
    %72 = vmatprep.subr.mxu0 0.0
    %73 = vmatpush1.msra.mxu0 0.0
    %74 = vmatprep.subr.mxu0 0.0
    %75 = vmatpush1.msra.mxu0 0.0
    %76 = vmatprep.subr.mxu0 0.0
    %77 = vmatpush1.msra.mxu0 0.0
    %78 = vmatprep.subr.mxu0 0.0
    %79 = vmatpush1.msra.mxu0 0.0
    %80 = vmatprep.subr.mxu0 0.0
    %81 = vmatpush1.msra.mxu0 0.0
    %82 = vmatprep.subr.mxu0 0.0
    %83 = vmatpush1.msra.mxu0 0.0
    %84 = vmatprep.subr.mxu0 0.0
    %85 = vmatpush1.msra.mxu0 0.0
    %86 = vmatprep.subr.mxu0 0.0
    %87 = vmatpush1.msra.mxu0 0.0
    %88 = vmatprep.subr.mxu0 0.0
    %89 = vmatpush1.msra.mxu0 0.0
    %90 = vmatprep.subr.mxu0 0.0
    %91 = vmatpush1.msra.mxu0 0.0
    %92 = vmatprep.subr.mxu0 0.0
    %93 = vmatpush1.msra.mxu0 0.0
    %94 = vmatprep.subr.mxu0 0.0
    %95 = vmatpush1.msra.mxu0 0.0
    %96 = vmatprep.subr.mxu0 0.0
    %97 = vmatpush1.msra.mxu0 0.0
    %98 = vmatprep.subr.mxu0 0.0
    %99 = vmatpush1.msra.mxu0 0.0
    %100 = vmatprep.subr.mxu0 0.0
    %101 = vmatpush1.msra.mxu0 0.0
    %102 = vmatprep.subr.mxu0 0.0
    %103 = vmatpush1.msra.mxu0 0.0
    %104 = vmatprep.subr.mxu0 0.0
    %105 = vmatpush1.msra.mxu0 0.0
    %106 = vmatprep.subr.mxu0 0.0
    %107 = vmatpush1.msra.mxu0 0.0
    %108 = vmatprep.subr.mxu0 0.0
    %109 = vmatpush1.msra.mxu0 0.0
    %110 = vmatprep.subr.mxu0 0.0
    %111 = vmatpush1.msra.mxu0 0.0
    %112 = vmatprep.subr.mxu0 0.0
    %113 = vmatpush1.msra.mxu0 0.0
    %114 = vmatprep.subr.mxu0 0.0
    %115 = vmatpush1.msra.mxu0 0.0
    %116 = vmatprep.subr.mxu0 0.0
    %117 = vmatpush1.msra.mxu0 0.0
    %118 = vmatprep.subr.mxu0 0.0
    %119 = vmatpush1.msra.mxu0 0.0
    %120 = vmatprep.mubr.f32.mxu0 0.0
    %121 = vmatmul.mubr.f32.gmra.mrb[0].mxu0 %v54
    %v122 = vpop.f32.mrb[0].mxu0
    %v123 = vadd.f32 %v50, %v122
    %v124 = vpop.f32.mrb[0].mxu0
    %125 = vdwg.mxu0
    %v126 = vmax.f32 %v123, 0.0
    %v127 = vld [vmem:[%s5] sm:$0xff]
    %v128 = vld [vmem:[%s5 + $0x8] sm:$0xff]
    %v129 = vld [vmem:[%s5 + $0x10] sm:$0xff]
    %v130 = vld [vmem:[%s5 + $0x18] sm:$0xff]
    %v131 = vld [vmem:[%s6] sm:$0x1]
    %v133 = vlaneseq
    %v134 = vshrl.u32 %v133, 7
    %v135 = vsub.s32 0, %v134
    %v136 = vrot.slane %v131, %v135
    %v139 = vsel %vm52, %v126, 0
    %141 = vmatprep.subr.mxu0 0.0
    %142 = vmatpush1.msra.mxu0 %v127
    %143 = vmatprep.subr.mxu0 0.0
    %144 = vmatpush1.msra.mxu0 %v128
    %145 = vmatprep.subr.mxu0 0.0
    %146 = vmatpush1.msra.mxu0 %v129
    %147 = vmatprep.subr.mxu0 0.0
    %148 = vmatpush1.msra.mxu0 %v130
    %149 = vmatprep.subr.mxu0 0.0
    %150 = vmatpush1.msra.mxu0 0.0
    %151 = vmatprep.subr.mxu0 0.0
    %152 = vmatpush1.msra.mxu0 0.0
    %153 = vmatprep.subr.mxu0 0.0
    %154 = vmatpush1.msra.mxu0 0.0
    %155 = vmatprep.subr.mxu0 0.0
    %156 = vmatpush1.msra.mxu0 0.0
    %157 = vmatprep.subr.mxu0 0.0
    %158 = vmatpush1.msra.mxu0 0.0
    %159 = vmatprep.subr.mxu0 0.0
    %160 = vmatpush1.msra.mxu0 0.0
    %161 = vmatprep.subr.mxu0 0.0
    %162 = vmatpush1.msra.mxu0 0.0
    %163 = vmatprep.subr.mxu0 0.0
    %164 = vmatpush1.msra.mxu0 0.0
    %165 = vmatprep.subr.mxu0 0.0
    %166 = vmatpush1.msra.mxu0 0.0
    %167 = vmatprep.subr.mxu0 0.0
    %168 = vmatpush1.msra.mxu0 0.0
    %169 = vmatprep.subr.mxu0 0.0
    %170 = vmatpush1.msra.mxu0 0.0
    %171 = vmatprep.subr.mxu0 0.0
    %172 = vmatpush1.msra.mxu0 0.0
    %173 = vmatprep.subr.mxu0 0.0
    %174 = vmatpush1.msra.mxu0 0.0
    %175 = vmatprep.subr.mxu0 0.0
    %176 = vmatpush1.msra.mxu0 0.0
    %177 = vmatprep.subr.mxu0 0.0
    %178 = vmatpush1.msra.mxu0 0.0
    %179 = vmatprep.subr.mxu0 0.0
    %180 = vmatpush1.msra.mxu0 0.0
    %181 = vmatprep.subr.mxu0 0.0
    %182 = vmatpush1.msra.mxu0 0.0
    %183 = vmatprep.subr.mxu0 0.0
    %184 = vmatpush1.msra.mxu0 0.0
    %185 = vmatprep.subr.mxu0 0.0
    %186 = vmatpush1.msra.mxu0 0.0
    %187 = vmatprep.subr.mxu0 0.0
    %188 = vmatpush1.msra.mxu0 0.0
    %189 = vmatprep.subr.mxu0 0.0
    %190 = vmatpush1.msra.mxu0 0.0
    %191 = vmatprep.subr.mxu0 0.0
    %192 = vmatpush1.msra.mxu0 0.0
    %193 = vmatprep.subr.mxu0 0.0
    %194 = vmatpush1.msra.mxu0 0.0
    %195 = vmatprep.subr.mxu0 0.0
    %196 = vmatpush1.msra.mxu0 0.0
    %197 = vmatprep.subr.mxu0 0.0
    %198 = vmatpush1.msra.mxu0 0.0
    %199 = vmatprep.subr.mxu0 0.0
    %200 = vmatpush1.msra.mxu0 0.0
    %201 = vmatprep.subr.mxu0 0.0
    %202 = vmatpush1.msra.mxu0 0.0
    %203 = vmatprep.subr.mxu0 0.0
    %204 = vmatpush1.msra.mxu0 0.0
    %205 = vmatprep.mubr.f32.mxu0 0.0
    %206 = vmatmul.mubr.f32.gmra.mrb[0].mxu0 %v139
    %v207 = vpop.f32.mrb[0].mxu0
    %v208 = vadd.f32 %v136, %v207
    %v209 = vpop.f32.mrb[0].mxu0
    %210 = vdwg.mxu0
    %v211 = vmax.f32 %v208, 0.0
    %v212 = vld [vmem:[%s7] sm:$0xff]
    %v213 = vld [vmem:[%s7 + $0x8] sm:$0xff]
    %v214 = vld [vmem:[%s7 + $0x10] sm:$0xff]
    %v215 = vld [vmem:[%s8] sm:$0x1]
    %v217 = vlaneseq
    %v218 = vshrl.u32 %v217, 7
    %v219 = vsub.s32 0, %v218
    %v220 = vrot.slane %v215, %v219
    %vm222 = vcmask 195584
    %v224 = vsel %vm222, %v211, 0
    %226 = vmatprep.subr.mxu0 0.0
    %227 = vmatpush1.msra.mxu0 %v212
    %228 = vmatprep.subr.mxu0 0.0
    %229 = vmatpush1.msra.mxu0 %v213
    %230 = vmatprep.subr.mxu0 0.0
    %231 = vmatpush1.msra.mxu0 %v214
    %232 = vmatprep.subr.mxu0 0.0
    %233 = vmatpush1.msra.mxu0 0.0
    %234 = vmatprep.subr.mxu0 0.0
    %235 = vmatpush1.msra.mxu0 0.0
    %236 = vmatprep.subr.mxu0 0.0
    %237 = vmatpush1.msra.mxu0 0.0
    %238 = vmatprep.subr.mxu0 0.0
    %239 = vmatpush1.msra.mxu0 0.0
    %240 = vmatprep.subr.mxu0 0.0
    %241 = vmatpush1.msra.mxu0 0.0
    %242 = vmatprep.subr.mxu0 0.0
    %243 = vmatpush1.msra.mxu0 0.0
    %244 = vmatprep.subr.mxu0 0.0
    %245 = vmatpush1.msra.mxu0 0.0
    %246 = vmatprep.subr.mxu0 0.0
    %247 = vmatpush1.msra.mxu0 0.0
    %248 = vmatprep.subr.mxu0 0.0
    %249 = vmatpush1.msra.mxu0 0.0
    %250 = vmatprep.subr.mxu0 0.0
    %251 = vmatpush1.msra.mxu0 0.0
    %252 = vmatprep.subr.mxu0 0.0
    %253 = vmatpush1.msra.mxu0 0.0
    %254 = vmatprep.subr.mxu0 0.0
    %255 = vmatpush1.msra.mxu0 0.0
    %256 = vmatprep.subr.mxu0 0.0
    %257 = vmatpush1.msra.mxu0 0.0
    %258 = vmatprep.subr.mxu0 0.0
    %259 = vmatpush1.msra.mxu0 0.0
    %260 = vmatprep.subr.mxu0 0.0
    %261 = vmatpush1.msra.mxu0 0.0
    %262 = vmatprep.subr.mxu0 0.0
    %263 = vmatpush1.msra.mxu0 0.0
    %264 = vmatprep.subr.mxu0 0.0
    %265 = vmatpush1.msra.mxu0 0.0
    %266 = vmatprep.subr.mxu0 0.0
    %267 = vmatpush1.msra.mxu0 0.0
    %268 = vmatprep.subr.mxu0 0.0
    %269 = vmatpush1.msra.mxu0 0.0
    %270 = vmatprep.subr.mxu0 0.0
    %271 = vmatpush1.msra.mxu0 0.0
    %272 = vmatprep.subr.mxu0 0.0
    %273 = vmatpush1.msra.mxu0 0.0
    %274 = vmatprep.subr.mxu0 0.0
    %275 = vmatpush1.msra.mxu0 0.0
    %276 = vmatprep.subr.mxu0 0.0
    %277 = vmatpush1.msra.mxu0 0.0
    %278 = vmatprep.subr.mxu0 0.0
    %279 = vmatpush1.msra.mxu0 0.0
    %280 = vmatprep.subr.mxu0 0.0
    %281 = vmatpush1.msra.mxu0 0.0
    %282 = vmatprep.subr.mxu0 0.0
    %283 = vmatpush1.msra.mxu0 0.0
    %284 = vmatprep.subr.mxu0 0.0
    %285 = vmatpush1.msra.mxu0 0.0
    %286 = vmatprep.subr.mxu0 0.0
    %287 = vmatpush1.msra.mxu0 0.0
    %288 = vmatprep.subr.mxu0 0.0
    %289 = vmatpush1.msra.mxu0 0.0
    %290 = vmatprep.mubr.f32.mxu0 0.0
    %291 = vmatmul.mubr.f32.gmra.mrb[0].mxu0 %v224
    %v292 = vpop.f32.mrb[0].mxu0
    %v293 = vadd.f32 %v220, %v292
    %v294 = vpop.f32.mrb[0].mxu0
    %295 = vdwg.mxu0
    %v296 = vmax.f32 %v293, 0.0
    %v297 = vld [vmem:[%s9] sm:$0xff]
    %v298 = vld [vmem:[%s9 + $0x8] sm:$0xff]
    %v299 = vld [vmem:[%s9 + $0x10] sm:$0xff]
    %v300 = vld [vmem:[%s9 + $0x18] sm:$0xff]
    %v301 = vld [vmem:[%s10] sm:$0x1]
    %v303 = vlaneseq
    %v304 = vshrl.u32 %v303, 7
    %v305 = vsub.s32 0, %v304
    %v306 = vrot.slane %v301, %v305
    %v309 = vsel %vm52, %v296, 0
    %311 = vmatprep.subr.mxu0 0.0
    %312 = vmatpush1.msra.mxu0 %v297
    %313 = vmatprep.subr.mxu0 0.0
    %314 = vmatpush1.msra.mxu0 %v298
    %315 = vmatprep.subr.mxu0 0.0
    %316 = vmatpush1.msra.mxu0 %v299
    %317 = vmatprep.subr.mxu0 0.0
    %318 = vmatpush1.msra.mxu0 %v300
    %319 = vmatprep.subr.mxu0 0.0
    %320 = vmatpush1.msra.mxu0 0.0
    %321 = vmatprep.subr.mxu0 0.0
    %322 = vmatpush1.msra.mxu0 0.0
    %323 = vmatprep.subr.mxu0 0.0
    %324 = vmatpush1.msra.mxu0 0.0
    %325 = vmatprep.subr.mxu0 0.0
    %326 = vmatpush1.msra.mxu0 0.0
    %327 = vmatprep.subr.mxu0 0.0
    %328 = vmatpush1.msra.mxu0 0.0
    %329 = vmatprep.subr.mxu0 0.0
    %330 = vmatpush1.msra.mxu0 0.0
    %331 = vmatprep.subr.mxu0 0.0
    %332 = vmatpush1.msra.mxu0 0.0
    %333 = vmatprep.subr.mxu0 0.0
    %334 = vmatpush1.msra.mxu0 0.0
    %335 = vmatprep.subr.mxu0 0.0
    %336 = vmatpush1.msra.mxu0 0.0
    %337 = vmatprep.subr.mxu0 0.0
    %338 = vmatpush1.msra.mxu0 0.0
    %339 = vmatprep.subr.mxu0 0.0
    %340 = vmatpush1.msra.mxu0 0.0
    %341 = vmatprep.subr.mxu0 0.0
    %342 = vmatpush1.msra.mxu0 0.0
    %343 = vmatprep.subr.mxu0 0.0
    %344 = vmatpush1.msra.mxu0 0.0
    %345 = vmatprep.subr.mxu0 0.0
    %346 = vmatpush1.msra.mxu0 0.0
    %347 = vmatprep.subr.mxu0 0.0
    %348 = vmatpush1.msra.mxu0 0.0
    %349 = vmatprep.subr.mxu0 0.0
    %350 = vmatpush1.msra.mxu0 0.0
    %351 = vmatprep.subr.mxu0 0.0
    %352 = vmatpush1.msra.mxu0 0.0
    %353 = vmatprep.subr.mxu0 0.0
    %354 = vmatpush1.msra.mxu0 0.0
    %355 = vmatprep.subr.mxu0 0.0
    %356 = vmatpush1.msra.mxu0 0.0
    %357 = vmatprep.subr.mxu0 0.0
    %358 = vmatpush1.msra.mxu0 0.0
    %359 = vmatprep.subr.mxu0 0.0
    %360 = vmatpush1.msra.mxu0 0.0
    %361 = vmatprep.subr.mxu0 0.0
    %362 = vmatpush1.msra.mxu0 0.0
    %363 = vmatprep.subr.mxu0 0.0
    %364 = vmatpush1.msra.mxu0 0.0
    %365 = vmatprep.subr.mxu0 0.0
    %366 = vmatpush1.msra.mxu0 0.0
    %367 = vmatprep.subr.mxu0 0.0
    %368 = vmatpush1.msra.mxu0 0.0
    %369 = vmatprep.subr.mxu0 0.0
    %370 = vmatpush1.msra.mxu0 0.0
    %371 = vmatprep.subr.mxu0 0.0
    %372 = vmatpush1.msra.mxu0 0.0
    %373 = vmatprep.subr.mxu0 0.0
    %374 = vmatpush1.msra.mxu0 0.0
    %375 = vmatprep.mubr.f32.mxu0 0.0
    %376 = vmatmul.mubr.f32.gmra.mrb[0].mxu0 %v309
    %v377 = vpop.f32.mrb[0].mxu0
    %v378 = vadd.f32 %v306, %v377
    %v379 = vpop.f32.mrb[0].mxu0
    %380 = vdwg.mxu0
    %v381 = vtanh.pop %v378
    %v382 = vsub.f32 0.0, %v381
    %v383 = vmul.f32 %v382, 1.442695
    %v384 = vpow.pop %v383
    %v385 = vld [vmem:[%s2] sm:$0x1]
    %v386 = vld [vmem:[%s2 + $0x1] sm:$0x1]
    %v387 = vlaneseq
    %v388 = vshrl.u32 %v387, 7
    %v389 = vsub.s32 0, %v388
    %v390 = vrot.slane %v385, %v389
    %v391 = vsub.f32 %v390, %v378
    %v392 = vmul.f32 %v391, %v391
    %v393 = vlaneseq
    %v394 = vshrl.u32 %v393, 7
    %v395 = vsub.s32 0, %v394
    %v396 = vrot.slane %v386, %v395
    %v397 = vadd.f32 %v396, %v392
    %v398 = vsub.f32 %v378, %v40
    %v399 = vmul.f32 %v398, %v398
    %v400 = vsub.f32 %v397, %v399
    %v401 = vmul.f32 %v384, 0.0625
    %403 = vrot.lane.b32.xlu0 %v401, 120
    %v404 = vpop.permute.xlu0 %403
    %v406 = vmul.f32 %v400, %v404
    %vm407 = vcmask 64512
    %v408 = vsel %vm407, %v406, 0.0
    %v409 = vrot.slane %v408, 4
    %v410 = vadd.f32 %v408, %v409
    %v411 = vrot.slane %v410, 2
    %v412 = vadd.f32 %v410, %v411
    %v413 = vrot.slane %v412, 1
    %v414 = vadd.f32 %v412, %v413
    %vm415 = vcmask 57344
    %416 = vst.msk [vmem:[#allocation2] sm:$0x1] %vm415, %v414
    // Predicated region
    $region46: #{tpu_custom_call.1} parent=1 // pred_check
      _
    $region47: #{tpu_custom_call.1} parent=1 // pred_check_branch
      %418 = sbr.rel (0) target = $region49
    $region48: #{tpu_custom_call.1} parent=1 // pred_region
      %s420 = ssub.s32 16, 16
      %421 = vsyncadd [#allocation3], %s420
      %s423 = sshll.u32 [#allocation2], 4
      %s424 = int_to_ptr.vmem [resolvable:$true] %s423
      %426 = dma.vmem_to_hbm [thread:$0]  %s424, 16, %s11, [#allocation3]
    $region49: #{tpu_custom_call.1} parent=1 // pred_fallthru
      _
    // Predicated region
    $region50: #{tpu_custom_call.1} parent=1 // pred_check
      _
    $region51: #{tpu_custom_call.1} parent=1 // pred_check_branch
      %428 = sbr.rel (0) target = $region53
    $region52: #{tpu_custom_call.1} parent=1 // pred_region
      %429 = dma.done [#allocation3], 16
    $region53: #{tpu_custom_call.1} parent=1 // pred_fallthru
      _
    %430 = vsyncpa [#allocation3], 1

</llo_original>
